<compile_context>
chip_gen: v7x
topology: tpu7x:2x2x1
jax: 0.10.0
libtpu: 0.0.40
codegen_flags: <defaults>
</compile_context>

<pallas_src>
import jax
import jax.numpy as jnp
from jax.experimental import pallas as pl
from jax.experimental.pallas import tpu as pltpu


def _make_kernel(c_in, c_out):
    """Channel mix + folded BN shift + ReLU on dense (TS_S, L) slabs (VPU only)."""

    def kernel(x1_ref, x2_ref, w1_ref, w2_ref, shift_ref, o_ref):
        # x1_ref, x2_ref: (C_in, TS_S, L) f32 VMEM tiles; each x_ref[c] is a
        # dense (8,128)-packed 2-D slab.  w1/w2: (C_out, C_in) SMEM scalars
        # (BN scale already folded in); shift: (C_out,) SMEM scalars.
        for o in range(c_out):
            acc = x1_ref[0] * w1_ref[o, 0] + shift_ref[o]
            acc = acc + x2_ref[0] * w2_ref[o, 0]
            for c in range(1, c_in):
                acc = acc + x1_ref[c] * w1_ref[o, c]
                acc = acc + x2_ref[c] * w2_ref[o, c]
            o_ref[o] = jnp.maximum(acc, 0.0).astype(o_ref.dtype)

    return kernel


def _largest_divisor_multiple(n, step, cap):
    """Largest d <= cap with d % step == 0 and n % d == 0, or None."""
    best = None
    d = step
    lim = min(n, cap)
    while d <= lim:
        if n % d == 0:
            best = d
        d += step
    return best


def lh_interaction(lh1, lh2, w1, w2, scale, shift):
    """lh1, lh2: (N, C, H, W) f32. w1, w2: (C_out, C_in). scale/shift: (C_out,)."""
    N, C, H, W = lh1.shape
    C_out = w1.shape[0]
    HW = H * W

    # Fold the BN scale into the conv weights (host side, free).
    w1_eff = (scale[:, None] * w1).astype(jnp.float32)
    w2_eff = (scale[:, None] * w2).astype(jnp.float32)
    shift = shift.astype(jnp.float32)

    # Flatten spatial dims (free, layout-preserving).  Pad the spatial axis to
    # a multiple of 128 if needed so every block obeys the (8,128) rule.
    x1 = lh1.reshape(N, C, HW)
    x2 = lh2.reshape(N, C, HW)
    hw_p = ((HW + 127) // 128) * 128
    if hw_p != HW:
        pad = ((0, 0), (0, 0), (0, hw_p - HW))
        x1 = jnp.pad(x1, pad)
        x2 = jnp.pad(x2, pad)

    # Lane axis L: large multiple of 128 (wide unmasked vst slabs).
    L = _largest_divisor_multiple(hw_p, 128, 1024)
    s_total = hw_p // L

    # Sublane tile TS_S: multiple of 8, sized for ~1.5 MiB per input tile.
    ts_cap = max(8, ((3 << 19) // (C * L * 4) // 8) * 8)
    ts_s = _largest_divisor_multiple(s_total, 8, ts_cap)
    if ts_s is None:
        # No multiple-of-8 divisor: full extent is always a legal block shape.
        # TODO(synk): exotic spatial sizes where s_total is huge with no
        # multiple-of-8 divisor fall back to one full-S block per step.
        ts_s = s_total

    n_s = s_total // ts_s
    # Keep the grid-step count even when cheap (v7x megacore balance).
    if (N * n_s) % 2 == 1 and ts_s % 16 == 0:
        ts_s //= 2
        n_s = s_total // ts_s

    x1 = x1.reshape(N, C, s_total, L)
    x2 = x2.reshape(N, C, s_total, L)

    x_spec = pl.BlockSpec((None, C, ts_s, L), lambda n, s: (n, 0, s, 0))
    out_spec = pl.BlockSpec((None, C_out, ts_s, L), lambda n, s: (n, 0, s, 0))
    smem_spec = pl.BlockSpec(memory_space=pltpu.MemorySpace.SMEM)

    # Double-buffered working set; raise the scoped-VMEM limit only if the
    # fallback path needs it (stay well below v7x's 64 MiB physical VMEM).
    tile_bytes = 4 * ts_s * L * (2 * C + C_out)
    working_set = 2 * tile_bytes
    vmem_limit = None
    if working_set > (12 << 20):
        vmem_limit = min(int(working_set * 3 // 2), 48 << 20)

    flops = N * hw_p * C_out * (4 * C + 2)
    bytes_accessed = 4 * hw_p * N * (2 * C + C_out)

    out = pl.pallas_call(
        _make_kernel(C, C_out),
        out_shape=jax.ShapeDtypeStruct((N, C_out, s_total, L), lh1.dtype),
        grid=(N, n_s),
        in_specs=[
            x_spec,      # LH1 tile (spatial: sublanes x lanes, dense)
            x_spec,      # LH2 tile
            smem_spec,   # w1 * scale  (C_out, C_in) scalars
            smem_spec,   # w2 * scale  (C_out, C_in) scalars
            smem_spec,   # folded conv-bias + BN shift (C_out,)
        ],
        out_specs=out_spec,
        compiler_params=pltpu.CompilerParams(
            dimension_semantics=("parallel", "parallel"),
            vmem_limit_bytes=vmem_limit),
        cost_estimate=pl.CostEstimate(
            flops=flops, transcendentals=0, bytes_accessed=bytes_accessed),
    )(x1, x2, w1_eff, w2_eff, shift)

    out = out.reshape(N, C_out, hw_p)
    if hw_p != HW:
        out = out[:, :, :HW]
    return out.reshape(N, C_out, H, W)


def make_params(key, c_in, c_out):
    """Deterministic synthetic parameters matching the module's __init__ shapes."""
    k = jax.random.split(key, 6)
    # Conv3d weight: (C_out, C_in, 2, 1, 1) -> two temporal taps, kept as
    # (C_out, C_in) so the kernel reads w[o, c] scalars directly.
    conv_w = jax.random.normal(k[0], (c_out, c_in, 2), jnp.float32) * 0.2
    conv_b = jax.random.normal(k[1], (c_out,), jnp.float32) * 0.1
    w1 = conv_w[:, :, 0]  # tap applied to LH1
    w2 = conv_w[:, :, 1]  # tap applied to LH2
    # BatchNorm3d params (inference-mode / running-stats semantics).
    # TODO(synk): training-mode BN (batch statistics) is not reproduced here.
    gamma = 1.0 + 0.1 * jax.random.normal(k[2], (c_out,), jnp.float32)
    beta = 0.1 * jax.random.normal(k[3], (c_out,), jnp.float32)
    run_mean = 0.1 * jax.random.normal(k[4], (c_out,), jnp.float32)
    run_var = jnp.abs(1.0 + 0.1 * jax.random.normal(k[5], (c_out,), jnp.float32))
    eps = 1e-5
    inv_std = gamma / jnp.sqrt(run_var + eps)
    scale = inv_std                                 # folded BN scale
    shift = (conv_b - run_mean) * inv_std + beta    # folded conv-bias + BN shift
    return w1, w2, scale, shift


def reference(lh1, lh2, w1, w2, scale, shift):
    # Pure-JAX reference for correctness checking (NCHW).
    y = (jnp.einsum('oc,nchw->nohw', w1, lh1)
         + jnp.einsum('oc,nchw->nohw', w2, lh2))
    y = y * scale[None, :, None, None] + shift[None, :, None, None]
    return jnp.maximum(y, 0.0)


if __name__ == "__main__":
    key = jax.random.PRNGKey(0)
    k_x1, k_x2, k_p = jax.random.split(key, 3)

    N, C, H, W = 2, 4, 16, 16
    lh1 = jax.random.normal(k_x1, (N, C, H, W), jnp.float32)
    lh2 = jax.random.normal(k_x2, (N, C, H, W), jnp.float32)

    w1, w2, scale, shift = make_params(k_p, C, C)

    out = lh_interaction(lh1, lh2, w1, w2, scale, shift)
    out = jax.block_until_ready(out)

    ref = reference(lh1, lh2, w1, w2, scale, shift)
    assert out.shape == (N, C, H, W)
    assert jnp.allclose(out, ref, atol=1e-5, rtol=1e-5)

    print("KERNEL_OK")
</pallas_src>

<mosaic_0001>
module attributes {stable_mosaic.version = 11 : i64} {
  func.func @kernel(%arg0: i32, %arg1: i32, %arg2: memref<1x4x1x256xf32, #tpu.memory_space<vmem>>, %arg3: memref<1x4x1x256xf32, #tpu.memory_space<vmem>>, %arg4: memref<4x4xf32, #tpu.memory_space<smem>>, %arg5: memref<4x4xf32, #tpu.memory_space<smem>>, %arg6: memref<4xf32, #tpu.memory_space<smem>>, %arg7: memref<1x4x1x256xf32, #tpu.memory_space<vmem>>) attributes {dimension_semantics = [#tpu.dimension_semantics<parallel>, #tpu.dimension_semantics<parallel>], iteration_bounds = array<i64: 2, 1>, scalar_prefetch = 0 : i64, scratch_operands = 0 : i64, tpu.core_type = #tpu.core_type<tc>, window_params = [{transform_indices = @transform_0, window_bounds = array<i64: 1, 4, 1, 256>}, {transform_indices = @transform_1, window_bounds = array<i64: 1, 4, 1, 256>}, {transform_indices = @transform_2, window_bounds = array<i64: 4, 4>}, {transform_indices = @transform_3, window_bounds = array<i64: 4, 4>}, {transform_indices = @transform_4, window_bounds = array<i64: 4>}, {transform_indices = @transform_5, window_bounds = array<i64: 1, 4, 1, 256>}]} {
    %c0 = arith.constant 0 : index
    %c0_0 = arith.constant 0 : index
    %c0_1 = arith.constant 0 : index
    %c0_2 = arith.constant 0 : index
    %0 = vector.load %arg2[%c0, %c0_0, %c0_1, %c0_2] : memref<1x4x1x256xf32, #tpu.memory_space<vmem>>, vector<1x1x1x256xf32>
    %1 = vector.shape_cast %0 : vector<1x1x1x256xf32> to vector<1x256xf32>
    %c0_3 = arith.constant 0 : index
    %c0_4 = arith.constant 0 : index
    %2 = memref.load %arg4[%c0_3, %c0_4] : memref<4x4xf32, #tpu.memory_space<smem>>
    %3 = vector.broadcast %2 : f32 to vector<1x256xf32>
    %4 = arith.mulf %1, %3 : vector<1x256xf32>
    %c0_5 = arith.constant 0 : index
    %5 = memref.load %arg6[%c0_5] : memref<4xf32, #tpu.memory_space<smem>>
    %6 = vector.broadcast %5 : f32 to vector<1x256xf32>
    %7 = arith.addf %4, %6 : vector<1x256xf32>
    %c0_6 = arith.constant 0 : index
    %c0_7 = arith.constant 0 : index
    %c0_8 = arith.constant 0 : index
    %c0_9 = arith.constant 0 : index
    %8 = vector.load %arg3[%c0_6, %c0_7, %c0_8, %c0_9] : memref<1x4x1x256xf32, #tpu.memory_space<vmem>>, vector<1x1x1x256xf32>
    %9 = vector.shape_cast %8 : vector<1x1x1x256xf32> to vector<1x256xf32>
    %c0_10 = arith.constant 0 : index
    %c0_11 = arith.constant 0 : index
    %10 = memref.load %arg5[%c0_10, %c0_11] : memref<4x4xf32, #tpu.memory_space<smem>>
    %11 = vector.broadcast %10 : f32 to vector<1x256xf32>
    %12 = arith.mulf %9, %11 : vector<1x256xf32>
    %13 = arith.addf %7, %12 : vector<1x256xf32>
    %c0_12 = arith.constant 0 : index
    %c1 = arith.constant 1 : index
    %c0_13 = arith.constant 0 : index
    %c0_14 = arith.constant 0 : index
    %14 = vector.load %arg2[%c0_12, %c1, %c0_13, %c0_14] : memref<1x4x1x256xf32, #tpu.memory_space<vmem>>, vector<1x1x1x256xf32>
    %15 = vector.shape_cast %14 : vector<1x1x1x256xf32> to vector<1x256xf32>
    %c0_15 = arith.constant 0 : index
    %c1_16 = arith.constant 1 : index
    %16 = memref.load %arg4[%c0_15, %c1_16] : memref<4x4xf32, #tpu.memory_space<smem>>
    %17 = vector.broadcast %16 : f32 to vector<1x256xf32>
    %18 = arith.mulf %15, %17 : vector<1x256xf32>
    %19 = arith.addf %13, %18 : vector<1x256xf32>
    %c0_17 = arith.constant 0 : index
    %c1_18 = arith.constant 1 : index
    %c0_19 = arith.constant 0 : index
    %c0_20 = arith.constant 0 : index
    %20 = vector.load %arg3[%c0_17, %c1_18, %c0_19, %c0_20] : memref<1x4x1x256xf32, #tpu.memory_space<vmem>>, vector<1x1x1x256xf32>
    %21 = vector.shape_cast %20 : vector<1x1x1x256xf32> to vector<1x256xf32>
    %c0_21 = arith.constant 0 : index
    %c1_22 = arith.constant 1 : index
    %22 = memref.load %arg5[%c0_21, %c1_22] : memref<4x4xf32, #tpu.memory_space<smem>>
    %23 = vector.broadcast %22 : f32 to vector<1x256xf32>
    %24 = arith.mulf %21, %23 : vector<1x256xf32>
    %25 = arith.addf %19, %24 : vector<1x256xf32>
    %c0_23 = arith.constant 0 : index
    %c2 = arith.constant 2 : index
    %c0_24 = arith.constant 0 : index
    %c0_25 = arith.constant 0 : index
    %26 = vector.load %arg2[%c0_23, %c2, %c0_24, %c0_25] : memref<1x4x1x256xf32, #tpu.memory_space<vmem>>, vector<1x1x1x256xf32>
    %27 = vector.shape_cast %26 : vector<1x1x1x256xf32> to vector<1x256xf32>
    %c0_26 = arith.constant 0 : index
    %c2_27 = arith.constant 2 : index
    %28 = memref.load %arg4[%c0_26, %c2_27] : memref<4x4xf32, #tpu.memory_space<smem>>
    %29 = vector.broadcast %28 : f32 to vector<1x256xf32>
    %30 = arith.mulf %27, %29 : vector<1x256xf32>
    %31 = arith.addf %25, %30 : vector<1x256xf32>
    %c0_28 = arith.constant 0 : index
    %c2_29 = arith.constant 2 : index
    %c0_30 = arith.constant 0 : index
    %c0_31 = arith.constant 0 : index
    %32 = vector.load %arg3[%c0_28, %c2_29, %c0_30, %c0_31] : memref<1x4x1x256xf32, #tpu.memory_space<vmem>>, vector<1x1x1x256xf32>
    %33 = vector.shape_cast %32 : vector<1x1x1x256xf32> to vector<1x256xf32>
    %c0_32 = arith.constant 0 : index
    %c2_33 = arith.constant 2 : index
    %34 = memref.load %arg5[%c0_32, %c2_33] : memref<4x4xf32, #tpu.memory_space<smem>>
    %35 = vector.broadcast %34 : f32 to vector<1x256xf32>
    %36 = arith.mulf %33, %35 : vector<1x256xf32>
    %37 = arith.addf %31, %36 : vector<1x256xf32>
    %c0_34 = arith.constant 0 : index
    %c3 = arith.constant 3 : index
    %c0_35 = arith.constant 0 : index
    %c0_36 = arith.constant 0 : index
    %38 = vector.load %arg2[%c0_34, %c3, %c0_35, %c0_36] : memref<1x4x1x256xf32, #tpu.memory_space<vmem>>, vector<1x1x1x256xf32>
    %39 = vector.shape_cast %38 : vector<1x1x1x256xf32> to vector<1x256xf32>
    %c0_37 = arith.constant 0 : index
    %c3_38 = arith.constant 3 : index
    %40 = memref.load %arg4[%c0_37, %c3_38] : memref<4x4xf32, #tpu.memory_space<smem>>
    %41 = vector.broadcast %40 : f32 to vector<1x256xf32>
    %42 = arith.mulf %39, %41 : vector<1x256xf32>
    %43 = arith.addf %37, %42 : vector<1x256xf32>
    %c0_39 = arith.constant 0 : index
    %c3_40 = arith.constant 3 : index
    %c0_41 = arith.constant 0 : index
    %c0_42 = arith.constant 0 : index
    %44 = vector.load %arg3[%c0_39, %c3_40, %c0_41, %c0_42] : memref<1x4x1x256xf32, #tpu.memory_space<vmem>>, vector<1x1x1x256xf32>
    %45 = vector.shape_cast %44 : vector<1x1x1x256xf32> to vector<1x256xf32>
    %c0_43 = arith.constant 0 : index
    %c3_44 = arith.constant 3 : index
    %46 = memref.load %arg5[%c0_43, %c3_44] : memref<4x4xf32, #tpu.memory_space<smem>>
    %47 = vector.broadcast %46 : f32 to vector<1x256xf32>
    %48 = arith.mulf %45, %47 : vector<1x256xf32>
    %49 = arith.addf %43, %48 : vector<1x256xf32>
    %cst = arith.constant 0.000000e+00 : f32
    %50 = vector.broadcast %cst : f32 to vector<1x256xf32>
    %51 = arith.maximumf %49, %50 : vector<1x256xf32>
    %c0_45 = arith.constant 0 : index
    %c0_46 = arith.constant 0 : index
    %c0_47 = arith.constant 0 : index
    %c0_48 = arith.constant 0 : index
    %52 = vector.load %arg7[%c0_45, %c0_46, %c0_47, %c0_48] : memref<1x4x1x256xf32, #tpu.memory_space<vmem>>, vector<1x1x1x256xf32>
    %53 = vector.shape_cast %52 : vector<1x1x1x256xf32> to vector<1x256xf32>
    %54 = vector.shape_cast %51 : vector<1x256xf32> to vector<1x1x1x256xf32>
    tpu.vector_store %arg7[%c0_45, %c0_46, %c0_47, %c0_48], %54 {strides = array<i32>} : memref<1x4x1x256xf32, #tpu.memory_space<vmem>>, vector<1x1x1x256xf32>,
    %c0_49 = arith.constant 0 : index
    %c0_50 = arith.constant 0 : index
    %c0_51 = arith.constant 0 : index
    %c0_52 = arith.constant 0 : index
    %55 = vector.load %arg2[%c0_49, %c0_50, %c0_51, %c0_52] : memref<1x4x1x256xf32, #tpu.memory_space<vmem>>, vector<1x1x1x256xf32>
    %56 = vector.shape_cast %55 : vector<1x1x1x256xf32> to vector<1x256xf32>
    %c1_53 = arith.constant 1 : index
    %c0_54 = arith.constant 0 : index
    %57 = memref.load %arg4[%c1_53, %c0_54] : memref<4x4xf32, #tpu.memory_space<smem>>
    %58 = vector.broadcast %57 : f32 to vector<1x256xf32>
    %59 = arith.mulf %56, %58 : vector<1x256xf32>
    %c1_55 = arith.constant 1 : index
    %60 = memref.load %arg6[%c1_55] : memref<4xf32, #tpu.memory_space<smem>>
    %61 = vector.broadcast %60 : f32 to vector<1x256xf32>
    %62 = arith.addf %59, %61 : vector<1x256xf32>
    %c0_56 = arith.constant 0 : index
    %c0_57 = arith.constant 0 : index
    %c0_58 = arith.constant 0 : index
    %c0_59 = arith.constant 0 : index
    %63 = vector.load %arg3[%c0_56, %c0_57, %c0_58, %c0_59] : memref<1x4x1x256xf32, #tpu.memory_space<vmem>>, vector<1x1x1x256xf32>
    %64 = vector.shape_cast %63 : vector<1x1x1x256xf32> to vector<1x256xf32>
    %c1_60 = arith.constant 1 : index
    %c0_61 = arith.constant 0 : index
    %65 = memref.load %arg5[%c1_60, %c0_61] : memref<4x4xf32, #tpu.memory_space<smem>>
    %66 = vector.broadcast %65 : f32 to vector<1x256xf32>
    %67 = arith.mulf %64, %66 : vector<1x256xf32>
    %68 = arith.addf %62, %67 : vector<1x256xf32>
    %c0_62 = arith.constant 0 : index
    %c1_63 = arith.constant 1 : index
    %c0_64 = arith.constant 0 : index
    %c0_65 = arith.constant 0 : index
    %69 = vector.load %arg2[%c0_62, %c1_63, %c0_64, %c0_65] : memref<1x4x1x256xf32, #tpu.memory_space<vmem>>, vector<1x1x1x256xf32>
    %70 = vector.shape_cast %69 : vector<1x1x1x256xf32> to vector<1x256xf32>
    %c1_66 = arith.constant 1 : index
    %c1_67 = arith.constant 1 : index
    %71 = memref.load %arg4[%c1_66, %c1_67] : memref<4x4xf32, #tpu.memory_space<smem>>
    %72 = vector.broadcast %71 : f32 to vector<1x256xf32>
    %73 = arith.mulf %70, %72 : vector<1x256xf32>
    %74 = arith.addf %68, %73 : vector<1x256xf32>
    %c0_68 = arith.constant 0 : index
    %c1_69 = arith.constant 1 : index
    %c0_70 = arith.constant 0 : index
    %c0_71 = arith.constant 0 : index
    %75 = vector.load %arg3[%c0_68, %c1_69, %c0_70, %c0_71] : memref<1x4x1x256xf32, #tpu.memory_space<vmem>>, vector<1x1x1x256xf32>
    %76 = vector.shape_cast %75 : vector<1x1x1x256xf32> to vector<1x256xf32>
    %c1_72 = arith.constant 1 : index
    %c1_73 = arith.constant 1 : index
    %77 = memref.load %arg5[%c1_72, %c1_73] : memref<4x4xf32, #tpu.memory_space<smem>>
    %78 = vector.broadcast %77 : f32 to vector<1x256xf32>
    %79 = arith.mulf %76, %78 : vector<1x256xf32>
    %80 = arith.addf %74, %79 : vector<1x256xf32>
    %c0_74 = arith.constant 0 : index
    %c2_75 = arith.constant 2 : index
    %c0_76 = arith.constant 0 : index
    %c0_77 = arith.constant 0 : index
    %81 = vector.load %arg2[%c0_74, %c2_75, %c0_76, %c0_77] : memref<1x4x1x256xf32, #tpu.memory_space<vmem>>, vector<1x1x1x256xf32>
    %82 = vector.shape_cast %81 : vector<1x1x1x256xf32> to vector<1x256xf32>
    %c1_78 = arith.constant 1 : index
    %c2_79 = arith.constant 2 : index
    %83 = memref.load %arg4[%c1_78, %c2_79] : memref<4x4xf32, #tpu.memory_space<smem>>
    %84 = vector.broadcast %83 : f32 to vector<1x256xf32>
    %85 = arith.mulf %82, %84 : vector<1x256xf32>
    %86 = arith.addf %80, %85 : vector<1x256xf32>
    %c0_80 = arith.constant 0 : index
    %c2_81 = arith.constant 2 : index
    %c0_82 = arith.constant 0 : index
    %c0_83 = arith.constant 0 : index
    %87 = vector.load %arg3[%c0_80, %c2_81, %c0_82, %c0_83] : memref<1x4x1x256xf32, #tpu.memory_space<vmem>>, vector<1x1x1x256xf32>
    %88 = vector.shape_cast %87 : vector<1x1x1x256xf32> to vector<1x256xf32>
    %c1_84 = arith.constant 1 : index
    %c2_85 = arith.constant 2 : index
    %89 = memref.load %arg5[%c1_84, %c2_85] : memref<4x4xf32, #tpu.memory_space<smem>>
    %90 = vector.broadcast %89 : f32 to vector<1x256xf32>
    %91 = arith.mulf %88, %90 : vector<1x256xf32>
    %92 = arith.addf %86, %91 : vector<1x256xf32>
    %c0_86 = arith.constant 0 : index
    %c3_87 = arith.constant 3 : index
    %c0_88 = arith.constant 0 : index
    %c0_89 = arith.constant 0 : index
    %93 = vector.load %arg2[%c0_86, %c3_87, %c0_88, %c0_89] : memref<1x4x1x256xf32, #tpu.memory_space<vmem>>, vector<1x1x1x256xf32>
    %94 = vector.shape_cast %93 : vector<1x1x1x256xf32> to vector<1x256xf32>
    %c1_90 = arith.constant 1 : index
    %c3_91 = arith.constant 3 : index
    %95 = memref.load %arg4[%c1_90, %c3_91] : memref<4x4xf32, #tpu.memory_space<smem>>
    %96 = vector.broadcast %95 : f32 to vector<1x256xf32>
    %97 = arith.mulf %94, %96 : vector<1x256xf32>
    %98 = arith.addf %92, %97 : vector<1x256xf32>
    %c0_92 = arith.constant 0 : index
    %c3_93 = arith.constant 3 : index
    %c0_94 = arith.constant 0 : index
    %c0_95 = arith.constant 0 : index
    %99 = vector.load %arg3[%c0_92, %c3_93, %c0_94, %c0_95] : memref<1x4x1x256xf32, #tpu.memory_space<vmem>>, vector<1x1x1x256xf32>
    %100 = vector.shape_cast %99 : vector<1x1x1x256xf32> to vector<1x256xf32>
    %c1_96 = arith.constant 1 : index
    %c3_97 = arith.constant 3 : index
    %101 = memref.load %arg5[%c1_96, %c3_97] : memref<4x4xf32, #tpu.memory_space<smem>>
    %102 = vector.broadcast %101 : f32 to vector<1x256xf32>
    %103 = arith.mulf %100, %102 : vector<1x256xf32>
    %104 = arith.addf %98, %103 : vector<1x256xf32>
    %cst_98 = arith.constant 0.000000e+00 : f32
    %105 = vector.broadcast %cst_98 : f32 to vector<1x256xf32>
    %106 = arith.maximumf %104, %105 : vector<1x256xf32>
    %c0_99 = arith.constant 0 : index
    %c1_100 = arith.constant 1 : index
    %c0_101 = arith.constant 0 : index
    %c0_102 = arith.constant 0 : index
    %107 = vector.load %arg7[%c0_99, %c1_100, %c0_101, %c0_102] : memref<1x4x1x256xf32, #tpu.memory_space<vmem>>, vector<1x1x1x256xf32>
    %108 = vector.shape_cast %107 : vector<1x1x1x256xf32> to vector<1x256xf32>
    %109 = vector.shape_cast %106 : vector<1x256xf32> to vector<1x1x1x256xf32>
    tpu.vector_store %arg7[%c0_99, %c1_100, %c0_101, %c0_102], %109 {strides = array<i32>} : memref<1x4x1x256xf32, #tpu.memory_space<vmem>>, vector<1x1x1x256xf32>,
    %c0_103 = arith.constant 0 : index
    %c0_104 = arith.constant 0 : index
    %c0_105 = arith.constant 0 : index
    %c0_106 = arith.constant 0 : index
    %110 = vector.load %arg2[%c0_103, %c0_104, %c0_105, %c0_106] : memref<1x4x1x256xf32, #tpu.memory_space<vmem>>, vector<1x1x1x256xf32>
    %111 = vector.shape_cast %110 : vector<1x1x1x256xf32> to vector<1x256xf32>
    %c2_107 = arith.constant 2 : index
    %c0_108 = arith.constant 0 : index
    %112 = memref.load %arg4[%c2_107, %c0_108] : memref<4x4xf32, #tpu.memory_space<smem>>
    %113 = vector.broadcast %112 : f32 to vector<1x256xf32>
    %114 = arith.mulf %111, %113 : vector<1x256xf32>
    %c2_109 = arith.constant 2 : index
    %115 = memref.load %arg6[%c2_109] : memref<4xf32, #tpu.memory_space<smem>>
    %116 = vector.broadcast %115 : f32 to vector<1x256xf32>
    %117 = arith.addf %114, %116 : vector<1x256xf32>
    %c0_110 = arith.constant 0 : index
    %c0_111 = arith.constant 0 : index
    %c0_112 = arith.constant 0 : index
    %c0_113 = arith.constant 0 : index
    %118 = vector.load %arg3[%c0_110, %c0_111, %c0_112, %c0_113] : memref<1x4x1x256xf32, #tpu.memory_space<vmem>>, vector<1x1x1x256xf32>
    %119 = vector.shape_cast %118 : vector<1x1x1x256xf32> to vector<1x256xf32>
    %c2_114 = arith.constant 2 : index
    %c0_115 = arith.constant 0 : index
    %120 = memref.load %arg5[%c2_114, %c0_115] : memref<4x4xf32, #tpu.memory_space<smem>>
    %121 = vector.broadcast %120 : f32 to vector<1x256xf32>
    %122 = arith.mulf %119, %121 : vector<1x256xf32>
    %123 = arith.addf %117, %122 : vector<1x256xf32>
    %c0_116 = arith.constant 0 : index
    %c1_117 = arith.constant 1 : index
    %c0_118 = arith.constant 0 : index
    %c0_119 = arith.constant 0 : index
    %124 = vector.load %arg2[%c0_116, %c1_117, %c0_118, %c0_119] : memref<1x4x1x256xf32, #tpu.memory_space<vmem>>, vector<1x1x1x256xf32>
    %125 = vector.shape_cast %124 : vector<1x1x1x256xf32> to vector<1x256xf32>
    %c2_120 = arith.constant 2 : index
    %c1_121 = arith.constant 1 : index
    %126 = memref.load %arg4[%c2_120, %c1_121] : memref<4x4xf32, #tpu.memory_space<smem>>
    %127 = vector.broadcast %126 : f32 to vector<1x256xf32>
    %128 = arith.mulf %125, %127 : vector<1x256xf32>
    %129 = arith.addf %123, %128 : vector<1x256xf32>
    %c0_122 = arith.constant 0 : index
    %c1_123 = arith.constant 1 : index
    %c0_124 = arith.constant 0 : index
    %c0_125 = arith.constant 0 : index
    %130 = vector.load %arg3[%c0_122, %c1_123, %c0_124, %c0_125] : memref<1x4x1x256xf32, #tpu.memory_space<vmem>>, vector<1x1x1x256xf32>
    %131 = vector.shape_cast %130 : vector<1x1x1x256xf32> to vector<1x256xf32>
    %c2_126 = arith.constant 2 : index
    %c1_127 = arith.constant 1 : index
    %132 = memref.load %arg5[%c2_126, %c1_127] : memref<4x4xf32, #tpu.memory_space<smem>>
    %133 = vector.broadcast %132 : f32 to vector<1x256xf32>
    %134 = arith.mulf %131, %133 : vector<1x256xf32>
    %135 = arith.addf %129, %134 : vector<1x256xf32>
    %c0_128 = arith.constant 0 : index
    %c2_129 = arith.constant 2 : index
    %c0_130 = arith.constant 0 : index
    %c0_131 = arith.constant 0 : index
    %136 = vector.load %arg2[%c0_128, %c2_129, %c0_130, %c0_131] : memref<1x4x1x256xf32, #tpu.memory_space<vmem>>, vector<1x1x1x256xf32>
    %137 = vector.shape_cast %136 : vector<1x1x1x256xf32> to vector<1x256xf32>
    %c2_132 = arith.constant 2 : index
    %c2_133 = arith.constant 2 : index
    %138 = memref.load %arg4[%c2_132, %c2_133] : memref<4x4xf32, #tpu.memory_space<smem>>
    %139 = vector.broadcast %138 : f32 to vector<1x256xf32>
    %140 = arith.mulf %137, %139 : vector<1x256xf32>
    %141 = arith.addf %135, %140 : vector<1x256xf32>
    %c0_134 = arith.constant 0 : index
    %c2_135 = arith.constant 2 : index
    %c0_136 = arith.constant 0 : index
    %c0_137 = arith.constant 0 : index
    %142 = vector.load %arg3[%c0_134, %c2_135, %c0_136, %c0_137] : memref<1x4x1x256xf32, #tpu.memory_space<vmem>>, vector<1x1x1x256xf32>
    %143 = vector.shape_cast %142 : vector<1x1x1x256xf32> to vector<1x256xf32>
    %c2_138 = arith.constant 2 : index
    %c2_139 = arith.constant 2 : index
    %144 = memref.load %arg5[%c2_138, %c2_139] : memref<4x4xf32, #tpu.memory_space<smem>>
    %145 = vector.broadcast %144 : f32 to vector<1x256xf32>
    %146 = arith.mulf %143, %145 : vector<1x256xf32>
    %147 = arith.addf %141, %146 : vector<1x256xf32>
    %c0_140 = arith.constant 0 : index
    %c3_141 = arith.constant 3 : index
    %c0_142 = arith.constant 0 : index
    %c0_143 = arith.constant 0 : index
    %148 = vector.load %arg2[%c0_140, %c3_141, %c0_142, %c0_143] : memref<1x4x1x256xf32, #tpu.memory_space<vmem>>, vector<1x1x1x256xf32>
    %149 = vector.shape_cast %148 : vector<1x1x1x256xf32> to vector<1x256xf32>
    %c2_144 = arith.constant 2 : index
    %c3_145 = arith.constant 3 : index
    %150 = memref.load %arg4[%c2_144, %c3_145] : memref<4x4xf32, #tpu.memory_space<smem>>
    %151 = vector.broadcast %150 : f32 to vector<1x256xf32>
    %152 = arith.mulf %149, %151 : vector<1x256xf32>
    %153 = arith.addf %147, %152 : vector<1x256xf32>
    %c0_146 = arith.constant 0 : index
    %c3_147 = arith.constant 3 : index
    %c0_148 = arith.constant 0 : index
    %c0_149 = arith.constant 0 : index
    %154 = vector.load %arg3[%c0_146, %c3_147, %c0_148, %c0_149] : memref<1x4x1x256xf32, #tpu.memory_space<vmem>>, vector<1x1x1x256xf32>
    %155 = vector.shape_cast %154 : vector<1x1x1x256xf32> to vector<1x256xf32>
    %c2_150 = arith.constant 2 : index
    %c3_151 = arith.constant 3 : index
    %156 = memref.load %arg5[%c2_150, %c3_151] : memref<4x4xf32, #tpu.memory_space<smem>>
    %157 = vector.broadcast %156 : f32 to vector<1x256xf32>
    %158 = arith.mulf %155, %157 : vector<1x256xf32>
    %159 = arith.addf %153, %158 : vector<1x256xf32>
    %cst_152 = arith.constant 0.000000e+00 : f32
    %160 = vector.broadcast %cst_152 : f32 to vector<1x256xf32>
    %161 = arith.maximumf %159, %160 : vector<1x256xf32>
    %c0_153 = arith.constant 0 : index
    %c2_154 = arith.constant 2 : index
    %c0_155 = arith.constant 0 : index
    %c0_156 = arith.constant 0 : index
    %162 = vector.load %arg7[%c0_153, %c2_154, %c0_155, %c0_156] : memref<1x4x1x256xf32, #tpu.memory_space<vmem>>, vector<1x1x1x256xf32>
    %163 = vector.shape_cast %162 : vector<1x1x1x256xf32> to vector<1x256xf32>
    %164 = vector.shape_cast %161 : vector<1x256xf32> to vector<1x1x1x256xf32>
    tpu.vector_store %arg7[%c0_153, %c2_154, %c0_155, %c0_156], %164 {strides = array<i32>} : memref<1x4x1x256xf32, #tpu.memory_space<vmem>>, vector<1x1x1x256xf32>,
    %c0_157 = arith.constant 0 : index
    %c0_158 = arith.constant 0 : index
    %c0_159 = arith.constant 0 : index
    %c0_160 = arith.constant 0 : index
    %165 = vector.load %arg2[%c0_157, %c0_158, %c0_159, %c0_160] : memref<1x4x1x256xf32, #tpu.memory_space<vmem>>, vector<1x1x1x256xf32>
    %166 = vector.shape_cast %165 : vector<1x1x1x256xf32> to vector<1x256xf32>
    %c3_161 = arith.constant 3 : index
    %c0_162 = arith.constant 0 : index
    %167 = memref.load %arg4[%c3_161, %c0_162] : memref<4x4xf32, #tpu.memory_space<smem>>
    %168 = vector.broadcast %167 : f32 to vector<1x256xf32>
    %169 = arith.mulf %166, %168 : vector<1x256xf32>
    %c3_163 = arith.constant 3 : index
    %170 = memref.load %arg6[%c3_163] : memref<4xf32, #tpu.memory_space<smem>>
    %171 = vector.broadcast %170 : f32 to vector<1x256xf32>
    %172 = arith.addf %169, %171 : vector<1x256xf32>
    %c0_164 = arith.constant 0 : index
    %c0_165 = arith.constant 0 : index
    %c0_166 = arith.constant 0 : index
    %c0_167 = arith.constant 0 : index
    %173 = vector.load %arg3[%c0_164, %c0_165, %c0_166, %c0_167] : memref<1x4x1x256xf32, #tpu.memory_space<vmem>>, vector<1x1x1x256xf32>
    %174 = vector.shape_cast %173 : vector<1x1x1x256xf32> to vector<1x256xf32>
    %c3_168 = arith.constant 3 : index
    %c0_169 = arith.constant 0 : index
    %175 = memref.load %arg5[%c3_168, %c0_169] : memref<4x4xf32, #tpu.memory_space<smem>>
    %176 = vector.broadcast %175 : f32 to vector<1x256xf32>
    %177 = arith.mulf %174, %176 : vector<1x256xf32>
    %178 = arith.addf %172, %177 : vector<1x256xf32>
    %c0_170 = arith.constant 0 : index
    %c1_171 = arith.constant 1 : index
    %c0_172 = arith.constant 0 : index
    %c0_173 = arith.constant 0 : index
    %179 = vector.load %arg2[%c0_170, %c1_171, %c0_172, %c0_173] : memref<1x4x1x256xf32, #tpu.memory_space<vmem>>, vector<1x1x1x256xf32>
    %180 = vector.shape_cast %179 : vector<1x1x1x256xf32> to vector<1x256xf32>
    %c3_174 = arith.constant 3 : index
    %c1_175 = arith.constant 1 : index
    %181 = memref.load %arg4[%c3_174, %c1_175] : memref<4x4xf32, #tpu.memory_space<smem>>
    %182 = vector.broadcast %181 : f32 to vector<1x256xf32>
    %183 = arith.mulf %180, %182 : vector<1x256xf32>
    %184 = arith.addf %178, %183 : vector<1x256xf32>
    %c0_176 = arith.constant 0 : index
    %c1_177 = arith.constant 1 : index
    %c0_178 = arith.constant 0 : index
    %c0_179 = arith.constant 0 : index
    %185 = vector.load %arg3[%c0_176, %c1_177, %c0_178, %c0_179] : memref<1x4x1x256xf32, #tpu.memory_space<vmem>>, vector<1x1x1x256xf32>
    %186 = vector.shape_cast %185 : vector<1x1x1x256xf32> to vector<1x256xf32>
    %c3_180 = arith.constant 3 : index
    %c1_181 = arith.constant 1 : index
    %187 = memref.load %arg5[%c3_180, %c1_181] : memref<4x4xf32, #tpu.memory_space<smem>>
    %188 = vector.broadcast %187 : f32 to vector<1x256xf32>
    %189 = arith.mulf %186, %188 : vector<1x256xf32>
    %190 = arith.addf %184, %189 : vector<1x256xf32>
    %c0_182 = arith.constant 0 : index
    %c2_183 = arith.constant 2 : index
    %c0_184 = arith.constant 0 : index
    %c0_185 = arith.constant 0 : index
    %191 = vector.load %arg2[%c0_182, %c2_183, %c0_184, %c0_185] : memref<1x4x1x256xf32, #tpu.memory_space<vmem>>, vector<1x1x1x256xf32>
    %192 = vector.shape_cast %191 : vector<1x1x1x256xf32> to vector<1x256xf32>
    %c3_186 = arith.constant 3 : index
    %c2_187 = arith.constant 2 : index
    %193 = memref.load %arg4[%c3_186, %c2_187] : memref<4x4xf32, #tpu.memory_space<smem>>
    %194 = vector.broadcast %193 : f32 to vector<1x256xf32>
    %195 = arith.mulf %192, %194 : vector<1x256xf32>
    %196 = arith.addf %190, %195 : vector<1x256xf32>
    %c0_188 = arith.constant 0 : index
    %c2_189 = arith.constant 2 : index
    %c0_190 = arith.constant 0 : index
    %c0_191 = arith.constant 0 : index
    %197 = vector.load %arg3[%c0_188, %c2_189, %c0_190, %c0_191] : memref<1x4x1x256xf32, #tpu.memory_space<vmem>>, vector<1x1x1x256xf32>
    %198 = vector.shape_cast %197 : vector<1x1x1x256xf32> to vector<1x256xf32>
    %c3_192 = arith.constant 3 : index
    %c2_193 = arith.constant 2 : index
    %199 = memref.load %arg5[%c3_192, %c2_193] : memref<4x4xf32, #tpu.memory_space<smem>>
    %200 = vector.broadcast %199 : f32 to vector<1x256xf32>
    %201 = arith.mulf %198, %200 : vector<1x256xf32>
    %202 = arith.addf %196, %201 : vector<1x256xf32>
    %c0_194 = arith.constant 0 : index
    %c3_195 = arith.constant 3 : index
    %c0_196 = arith.constant 0 : index
    %c0_197 = arith.constant 0 : index
    %203 = vector.load %arg2[%c0_194, %c3_195, %c0_196, %c0_197] : memref<1x4x1x256xf32, #tpu.memory_space<vmem>>, vector<1x1x1x256xf32>
    %204 = vector.shape_cast %203 : vector<1x1x1x256xf32> to vector<1x256xf32>
    %c3_198 = arith.constant 3 : index
    %c3_199 = arith.constant 3 : index
    %205 = memref.load %arg4[%c3_198, %c3_199] : memref<4x4xf32, #tpu.memory_space<smem>>
    %206 = vector.broadcast %205 : f32 to vector<1x256xf32>
    %207 = arith.mulf %204, %206 : vector<1x256xf32>
    %208 = arith.addf %202, %207 : vector<1x256xf32>
    %c0_200 = arith.constant 0 : index
    %c3_201 = arith.constant 3 : index
    %c0_202 = arith.constant 0 : index
    %c0_203 = arith.constant 0 : index
    %209 = vector.load %arg3[%c0_200, %c3_201, %c0_202, %c0_203] : memref<1x4x1x256xf32, #tpu.memory_space<vmem>>, vector<1x1x1x256xf32>
    %210 = vector.shape_cast %209 : vector<1x1x1x256xf32> to vector<1x256xf32>
    %c3_204 = arith.constant 3 : index
    %c3_205 = arith.constant 3 : index
    %211 = memref.load %arg5[%c3_204, %c3_205] : memref<4x4xf32, #tpu.memory_space<smem>>
    %212 = vector.broadcast %211 : f32 to vector<1x256xf32>
    %213 = arith.mulf %210, %212 : vector<1x256xf32>
    %214 = arith.addf %208, %213 : vector<1x256xf32>
    %cst_206 = arith.constant 0.000000e+00 : f32
    %215 = vector.broadcast %cst_206 : f32 to vector<1x256xf32>
    %216 = arith.maximumf %214, %215 : vector<1x256xf32>
    %c0_207 = arith.constant 0 : index
    %c3_208 = arith.constant 3 : index
    %c0_209 = arith.constant 0 : index
    %c0_210 = arith.constant 0 : index
    %217 = vector.load %arg7[%c0_207, %c3_208, %c0_209, %c0_210] : memref<1x4x1x256xf32, #tpu.memory_space<vmem>>, vector<1x1x1x256xf32>
    %218 = vector.shape_cast %217 : vector<1x1x1x256xf32> to vector<1x256xf32>
    %219 = vector.shape_cast %216 : vector<1x256xf32> to vector<1x1x1x256xf32>
    tpu.vector_store %arg7[%c0_207, %c3_208, %c0_209, %c0_210], %219 {strides = array<i32>} : memref<1x4x1x256xf32, #tpu.memory_space<vmem>>, vector<1x1x1x256xf32>,
    return
  }
  func.func @transform_0(%arg0: i32, %arg1: i32) -> (i32, i32, i32, i32) {
    %c0_i32 = arith.constant 0 : i32
    %c0_i32_0 = arith.constant 0 : i32
    %c0_i32_1 = arith.constant 0 : i32
    return %arg0, %c0_i32, %arg1, %c0_i32_0 : i32, i32, i32, i32
  }
  func.func @transform_1(%arg0: i32, %arg1: i32) -> (i32, i32, i32, i32) {
    %c0_i32 = arith.constant 0 : i32
    %c0_i32_0 = arith.constant 0 : i32
    %c0_i32_1 = arith.constant 0 : i32
    return %arg0, %c0_i32, %arg1, %c0_i32_0 : i32, i32, i32, i32
  }
  func.func @transform_2(%arg0: i32, %arg1: i32) -> (i32, i32) {
    %c0_i32 = arith.constant 0 : i32
    %c0_i32_0 = arith.constant 0 : i32
    %c0_i32_1 = arith.constant 0 : i32
    return %c0_i32, %c0_i32_0 : i32, i32
  }
  func.func @transform_3(%arg0: i32, %arg1: i32) -> (i32, i32) {
    %c0_i32 = arith.constant 0 : i32
    %c0_i32_0 = arith.constant 0 : i32
    %c0_i32_1 = arith.constant 0 : i32
    return %c0_i32, %c0_i32_0 : i32, i32
  }
  func.func @transform_4(%arg0: i32, %arg1: i32) -> i32 {
    %c0_i32 = arith.constant 0 : i32
    %c0_i32_0 = arith.constant 0 : i32
    return %c0_i32 : i32
  }
  func.func @transform_5(%arg0: i32, %arg1: i32) -> (i32, i32, i32, i32) {
    %c0_i32 = arith.constant 0 : i32
    %c0_i32_0 = arith.constant 0 : i32
    %c0_i32_1 = arith.constant 0 : i32
    return %arg0, %c0_i32, %arg1, %c0_i32_0 : i32, i32, i32, i32
  }
}

</mosaic_0001>

<llo_original>
// kernel: tpu_custom_call.1
$region0: #{tpu_custom_call.1}
  #allocation0 [shape = 'u32[]', space=smem, size = 0x4, offset = 0x4, fixed_abs, tag = 'smem constant byte address 0x4 - core index']
  #allocation1 [shape = 'u32[144,128]{1,0:T(1,128)}', space=vmem, size = 0x12000, scoped, tag = 'internal scratch']
  %s0 = inlined_call_operand.hbm [shape: f32[2,4,1,256], index: 0, kind: input, shape index: {}]
  %s1 = inlined_call_operand.hbm [shape: f32[2,4,1,256], index: 1, kind: input, shape index: {}]
  %s2 = inlined_call_operand.vmem [shape: f32[4,4], index: 2, kind: input, shape index: {}]
  %s3 = inlined_call_operand.vmem [shape: f32[4,4], index: 3, kind: input, shape index: {}]
  %s4 = inlined_call_operand.vmem [shape: f32[4], index: 4, kind: input, shape index: {}]
  %s5 = inlined_call_operand.hbm [shape: f32[2,4,1,256], index: 5, kind: output, shape index: {}]
  %s6 = sld [smem:[#allocation0]]
  $region73: #{tpu_custom_call.1} parent=0
    _
  %s8 = ssub.s32 1, %s6
  %s9 = scalar_select 0, %s8, %s6
  $region1: #{tpu_custom_call.1} parent=0
    #allocation2 [shape = 'u8[8192]{0}', space=vmem, size = 0x2000, scoped, tag = 'input window, operand 0']
    #allocation3 [shape = 's32[2]{0}', space=sflag, size = 0x8, scoped, tag = 'scoped memory for tpu_custom_call.1']
    #allocation4 [shape = 's32[2]{0}', space=sflag, size = 0x8, scoped, tag = 'scoped memory for tpu_custom_call.1']
    #allocation5 [shape = 's32[2]{0}', space=sflag, size = 0x8, scoped, tag = 'scoped memory for tpu_custom_call.1']
    #allocation6 [shape = 'u8[8192]{0}', space=vmem, size = 0x2000, scoped, tag = 'input window, operand 1']
    #allocation7 [shape = 's32[2]{0}', space=sflag, size = 0x8, scoped, tag = 'scoped memory for tpu_custom_call.1']
    #allocation8 [shape = 'u8[2048]{0}', space=smem, size = 0x800, scoped, tag = 'input window, operand 2, single buffered']
    #allocation9 [shape = 'u8[2048]{0}', space=smem, size = 0x800, scoped, tag = 'input window, operand 3, single buffered']
    #allocation10 [shape = 's32[1]{0}', space=sflag, size = 0x4, scoped, tag = 'scoped memory for tpu_custom_call.1']
    #allocation11 [shape = 'u8[512]{0}', space=smem, size = 0x200, scoped, tag = 'input window, operand 4, single buffered']
    #allocation12 [shape = 'u8[8192]{0}', space=vmem, size = 0x2000, scoped, tag = 'output window, operand 0']
    %10 = vsyncpa [#allocation3], 0
    %s11 = scalar_lea.sflag [#allocation3], 1
    %12 = vsyncpa %s11, 0
    %13 = vsyncpa [#allocation7], 0
    %s14 = scalar_lea.sflag [#allocation7], 1
    %15 = vsyncpa %s14, 0
    %16 = vsyncpa [#allocation5], 0
    %17 = vsyncpa [#allocation10], 0
    %18 = vsyncpa [#allocation4], 0
    %s19 = scalar_lea.sflag [#allocation4], 1
    %20 = vsyncpa %s19, 0
    loop: start=0, step=1, limit=4
    $region2: #{tpu_custom_call.1} parent=1 // loop_pre_header
      _
    $region3: #{tpu_custom_call.1} parent=1 // loop_header
      %s22 = sphi 0, %s26
      %p23 = scmp.ge.s32.totalorder %s22, 4
      %s29 = sphi 0, %s41
      %s30 = sphi 0, %s37
      %s31 = sphi 0, %s29
      %s32 = sphi 0, %s30
      %s33 = sphi 0, %s31
      %s34 = sphi 0, %s32
      %s46 = sphi 0, %s48
      %s49 = sphi 0, %s46
      %s50 = sphi 0, %s49
      %s66 = sphi 0, %s50
      %s74 = sphi 0, %s76
      %s77 = sphi 0, %s74
      %s78 = sphi 0, %s77
      %s94 = sphi 0, %s78
      %s98 = sphi 0, %s98
      %s100 = sphi 0, %s98
      %s101 = sphi 0, %s100
      %s115 = sphi 0, %s101
      %s119 = sphi 0, %s119
      %s121 = sphi 0, %s119
      %s122 = sphi 0, %s121
      %s136 = sphi 0, %s122
      %s140 = sphi 0, %s140
      %s142 = sphi 0, %s140
      %s143 = sphi 0, %s142
      %s157 = sphi 0, %s143
      %s165 = sphi 0, %s167
      %s168 = sphi 0, %s165
      %s169 = sphi 0, %s168
      %s185 = sphi 0, %s169
    $region4: #{tpu_custom_call.1} parent=1 // loop_header_branch
      %25 = sbr.rel (%p23) target = $region8
    $region5: #{tpu_custom_call.1} parent=1 // loop_body
      %s27 = ssub.s32 %s22, 1
      %s28 = ssub.s32 %s22, 2
      %s35 = sadd.s32 1, %s30
      %p36 = scmp.ge.s32.totalorder %s35, 1
      %s37 = scalar_select %p36, 0, %s35
      %s38 = sadd.s32 1, %s29
      %s39 = scalar_select %p36, %s38, %s29
      %p40 = scmp.ge.s32.totalorder %s39, 2
      %s41 = scalar_select %p40, 0, %s39
      %s42 = ssub.s32 %s29, %s41
      %s43 = ssub.s32 %s30, %s37
      %s44 = sor.u32 %s42, %s43
      %p45 = scmp.eq.s32.totalorder %s44, 0
      %s47 = sadd.s32 %s46, 1
      %s48 = scalar_select %p45, %s46, %s47
      %p51 = pneg %p45
      %p52 = scmp.eq.s32.totalorder %s22, 1
      %p53 = por %p51, %p52
      %p54 = scmp.ne.s32.totalorder %s46, %s49
      %p55 = scmp.eq.s32.totalorder %s22, 0
      %p56 = por %p54, %p55
      %p57 = scmp.ne.s32.totalorder %s46, %s49
      %p58 = scmp.eq.s32.totalorder %s27, 1
      %p59 = por %p57, %p58
      %p60 = scmp.ne.s32.totalorder %s49, %s50
      %p61 = scmp.eq.s32.totalorder %s27, 0
      %p62 = por %p60, %p61
      %p63 = scmp.ne.s32.totalorder %s49, %s50
      %p64 = scmp.eq.s32.totalorder %s28, 1
      %p65 = por %p63, %p64
      %p67 = scmp.ne.s32.totalorder %s50, %s66
      %p68 = scmp.eq.s32.totalorder %s28, 0
      %p69 = por %p67, %p68
      %s70 = ssub.s32 %s29, %s41
      %s71 = ssub.s32 %s30, %s37
      %s72 = sor.u32 %s70, %s71
      %p73 = scmp.eq.s32.totalorder %s72, 0
      %s75 = sadd.s32 %s74, 1
      %s76 = scalar_select %p73, %s74, %s75
      %p79 = pneg %p73
      %p80 = scmp.eq.s32.totalorder %s22, 1
      %p81 = por %p79, %p80
      %p82 = scmp.ne.s32.totalorder %s74, %s77
      %p83 = scmp.eq.s32.totalorder %s22, 0
      %p84 = por %p82, %p83
      %p85 = scmp.ne.s32.totalorder %s74, %s77
      %p86 = scmp.eq.s32.totalorder %s27, 1
      %p87 = por %p85, %p86
      %p88 = scmp.ne.s32.totalorder %s77, %s78
      %p89 = scmp.eq.s32.totalorder %s27, 0
      %p90 = por %p88, %p89
      %p91 = scmp.ne.s32.totalorder %s77, %s78
      %p92 = scmp.eq.s32.totalorder %s28, 1
      %p93 = por %p91, %p92
      %p95 = scmp.ne.s32.totalorder %s78, %s94
      %p96 = scmp.eq.s32.totalorder %s28, 0
      %p97 = por %p95, %p96
      %s99 = sadd.s32 %s98, 1
      %p102 = scmp.eq.s32.totalorder %s22, 1
      %p103 = scmp.ne.s32.totalorder %s98, %s100
      %p104 = scmp.eq.s32.totalorder %s22, 0
      %p105 = por %p103, %p104
      %p106 = scmp.ne.s32.totalorder %s98, %s100
      %p107 = scmp.eq.s32.totalorder %s27, 1
      %p108 = por %p106, %p107
      %p109 = scmp.ne.s32.totalorder %s100, %s101
      %p110 = scmp.eq.s32.totalorder %s27, 0
      %p111 = por %p109, %p110
      %p112 = scmp.ne.s32.totalorder %s100, %s101
      %p113 = scmp.eq.s32.totalorder %s28, 1
      %p114 = por %p112, %p113
      %p116 = scmp.ne.s32.totalorder %s101, %s115
      %p117 = scmp.eq.s32.totalorder %s28, 0
      %p118 = por %p116, %p117
      %s120 = sadd.s32 %s119, 1
      %p123 = scmp.eq.s32.totalorder %s22, 1
      %p124 = scmp.ne.s32.totalorder %s119, %s121
      %p125 = scmp.eq.s32.totalorder %s22, 0
      %p126 = por %p124, %p125
      %p127 = scmp.ne.s32.totalorder %s119, %s121
      %p128 = scmp.eq.s32.totalorder %s27, 1
      %p129 = por %p127, %p128
      %p130 = scmp.ne.s32.totalorder %s121, %s122
      %p131 = scmp.eq.s32.totalorder %s27, 0
      %p132 = por %p130, %p131
      %p133 = scmp.ne.s32.totalorder %s121, %s122
      %p134 = scmp.eq.s32.totalorder %s28, 1
      %p135 = por %p133, %p134
      %p137 = scmp.ne.s32.totalorder %s122, %s136
      %p138 = scmp.eq.s32.totalorder %s28, 0
      %p139 = por %p137, %p138
      %s141 = sadd.s32 %s140, 1
      %p144 = scmp.eq.s32.totalorder %s22, 1
      %p145 = scmp.ne.s32.totalorder %s140, %s142
      %p146 = scmp.eq.s32.totalorder %s22, 0
      %p147 = por %p145, %p146
      %p148 = scmp.ne.s32.totalorder %s140, %s142
      %p149 = scmp.eq.s32.totalorder %s27, 1
      %p150 = por %p148, %p149
      %p151 = scmp.ne.s32.totalorder %s142, %s143
      %p152 = scmp.eq.s32.totalorder %s27, 0
      %p153 = por %p151, %p152
      %p154 = scmp.ne.s32.totalorder %s142, %s143
      %p155 = scmp.eq.s32.totalorder %s28, 1
      %p156 = por %p154, %p155
      %p158 = scmp.ne.s32.totalorder %s143, %s157
      %p159 = scmp.eq.s32.totalorder %s28, 0
      %p160 = por %p158, %p159
      %s161 = ssub.s32 %s29, %s41
      %s162 = ssub.s32 %s30, %s37
      %s163 = sor.u32 %s161, %s162
      %p164 = scmp.eq.s32.totalorder %s163, 0
      %s166 = sadd.s32 %s165, 1
      %s167 = scalar_select %p164, %s165, %s166
      %p170 = pneg %p164
      %p171 = scmp.eq.s32.totalorder %s22, 1
      %p172 = por %p170, %p171
      %p173 = scmp.ne.s32.totalorder %s165, %s168
      %p174 = scmp.eq.s32.totalorder %s22, 0
      %p175 = por %p173, %p174
      %p176 = scmp.ne.s32.totalorder %s165, %s168
      %p177 = scmp.eq.s32.totalorder %s27, 1
      %p178 = por %p176, %p177
      %p179 = scmp.ne.s32.totalorder %s168, %s169
      %p180 = scmp.eq.s32.totalorder %s27, 0
      %p181 = por %p179, %p180
      %p182 = scmp.ne.s32.totalorder %s168, %s169
      %p183 = scmp.eq.s32.totalorder %s28, 1
      %p184 = por %p182, %p183
      %p186 = scmp.ne.s32.totalorder %s169, %s185
      %p187 = scmp.eq.s32.totalorder %s28, 0
      %p188 = por %p186, %p187
      %p189 = scmp.le.s32.totalorder 1, %s22
      %p190 = scmp.lt.s32.totalorder %s22, 3
      %p191 = pnand %p189, %p190
      %p192 = pneg %p191
      // Predicated region
      $region9: #{tpu_custom_call.1} parent=5 // pred_check
        _
      $region10: #{tpu_custom_call.1} parent=5 // pred_check_branch
        %194 = sbr.rel (%p191) target = $region12
      $region11: #{tpu_custom_call.1} parent=5 // pred_region
        %s195 = ssub.s32 %s22, 1
        // Predicated region
        $region13: #{tpu_custom_call.1} parent=11 // pred_check
          %p196 = pneg %p111
        $region14: #{tpu_custom_call.1} parent=11 // pred_check_branch
          %198 = sbr.rel (%p196) target = $region16
        $region15: #{tpu_custom_call.1} parent=11 // pred_region
          %s200 = ssub.s32 64, 64
          %201 = vsyncadd [#allocation5], %s200
          %s203 = sshll.u32 %s2, 4
          %s204 = int_to_ptr.vmem [resolvable:$true] %s203
          %206 = dma.vmem_to_smem %s204, 64, [#allocation8], [#allocation5]
        $region16: #{tpu_custom_call.1} parent=11 // pred_fallthru
          _
        // Predicated region
        $region17: #{tpu_custom_call.1} parent=11 // pred_check
          %p207 = pneg %p132
        $region18: #{tpu_custom_call.1} parent=11 // pred_check_branch
          %209 = sbr.rel (%p207) target = $region20
        $region19: #{tpu_custom_call.1} parent=11 // pred_region
          %s211 = ssub.s32 64, 64
          %212 = vsyncadd [#allocation10], %s211
          %s214 = sshll.u32 %s3, 4
          %s215 = int_to_ptr.vmem [resolvable:$true] %s214
          %217 = dma.vmem_to_smem %s215, 64, [#allocation9], [#allocation10]
        $region20: #{tpu_custom_call.1} parent=11 // pred_fallthru
          _
        // Predicated region
        $region21: #{tpu_custom_call.1} parent=11 // pred_check
          %p218 = pneg %p153
        $region22: #{tpu_custom_call.1} parent=11 // pred_check_branch
          %220 = sbr.rel (%p218) target = $region24
        $region23: #{tpu_custom_call.1} parent=11 // pred_region
          %s222 = ssub.s32 16, 16
          %223 = vsyncadd [#allocation10], %s222
          %s225 = sshll.u32 %s4, 4
          %s226 = int_to_ptr.vmem [resolvable:$true] %s225
          %228 = dma.vmem_to_smem %s226, 16, [#allocation11], [#allocation10]
        $region24: #{tpu_custom_call.1} parent=11 // pred_fallthru
          _
      $region12: #{tpu_custom_call.1} parent=5 // pred_fallthru
        _
      %p229 = scmp.lt.s32.totalorder %s22, 2
      // Predicated region
      $region25: #{tpu_custom_call.1} parent=5 // pred_check
        %p230 = pneg %p229
      $region26: #{tpu_custom_call.1} parent=5 // pred_check_branch
        %232 = sbr.rel (%p230) target = $region28
      $region27: #{tpu_custom_call.1} parent=5 // pred_region
        // Predicated region
        $region29: #{tpu_custom_call.1} parent=27 // pred_check
          %p233 = pneg %p56
        $region30: #{tpu_custom_call.1} parent=27 // pred_check_branch
          %235 = sbr.rel (%p233) target = $region32
        $region31: #{tpu_custom_call.1} parent=27 // pred_region
          %s236 = sand.u32 %s46, 1
          %s237 = scalar_lea.sflag [#allocation3], %s236
          %s238 = sand.u32 %s46, 1
          %s239 = smul.addr %s238, 8
          %s240 = scalar_lea.vmem [#allocation2], %s239
          %s242 = ssub.s32 128, 128
          %243 = vsyncadd %s237, %s242
          %s244 = smul.addr %s30, 2
          %s245 = smul.addr %s29, 8
          %s246 = sadd.s32 %s244, %s245
          %s247 = smul.addr %s246, 16
          %s248 = scalar_lea.hbm %s0, %s247
          %s249 = sshll.u32 %s240, 4
          %s250 = int_to_ptr.vmem [resolvable:$true] %s249
          %255 = dma.hbm_to_vmem [thread:$0]  %s248, 128, %s250, %s237, 32, 32, 2
        $region32: #{tpu_custom_call.1} parent=27 // pred_fallthru
          _
        // Predicated region
        $region33: #{tpu_custom_call.1} parent=27 // pred_check
          %p256 = pneg %p84
        $region34: #{tpu_custom_call.1} parent=27 // pred_check_branch
          %258 = sbr.rel (%p256) target = $region36
        $region35: #{tpu_custom_call.1} parent=27 // pred_region
          %s259 = sand.u32 %s74, 1
          %s260 = scalar_lea.sflag [#allocation7], %s259
          %s261 = sand.u32 %s74, 1
          %s262 = smul.addr %s261, 8
          %s263 = scalar_lea.vmem [#allocation6], %s262
          %s265 = ssub.s32 128, 128
          %266 = vsyncadd %s260, %s265
          %s267 = smul.addr %s30, 2
          %s268 = smul.addr %s29, 8
          %s269 = sadd.s32 %s267, %s268
          %s270 = smul.addr %s269, 16
          %s271 = scalar_lea.hbm %s1, %s270
          %s272 = sshll.u32 %s263, 4
          %s273 = int_to_ptr.vmem [resolvable:$true] %s272
          %278 = dma.hbm_to_vmem [thread:$0]  %s271, 128, %s273, %s260, 32, 32, 2
        $region36: #{tpu_custom_call.1} parent=27 // pred_fallthru
          _
      $region28: #{tpu_custom_call.1} parent=5 // pred_fallthru
        _
      %p279 = scmp.le.s32.totalorder 1, %s22
      %p280 = scmp.lt.s32.totalorder %s22, 3
      %p281 = pnand %p279, %p280
      %p282 = pneg %p281
      // Predicated region
      $region37: #{tpu_custom_call.1} parent=5 // pred_check
        _
      $region38: #{tpu_custom_call.1} parent=5 // pred_check_branch
        %284 = sbr.rel (%p281) target = $region40
      $region39: #{tpu_custom_call.1} parent=5 // pred_region
        %s285 = ssub.s32 %s22, 1
        %s286 = sand.u32 %s49, 1
        %s287 = scalar_lea.sflag [#allocation3], %s286
        %s288 = sand.u32 %s49, 1
        %s289 = smul.addr %s288, 8
        %s290 = scalar_lea.vmem [#allocation2], %s289
        // Predicated region
        $region41: #{tpu_custom_call.1} parent=39 // pred_check
          %p291 = pneg %p62
        $region42: #{tpu_custom_call.1} parent=39 // pred_check_branch
          %293 = sbr.rel (%p291) target = $region44
        $region43: #{tpu_custom_call.1} parent=39 // pred_region
          %294 = dma.done %s287, 128
        $region44: #{tpu_custom_call.1} parent=39 // pred_fallthru
          _
        %s295 = sand.u32 %s77, 1
        %s296 = scalar_lea.sflag [#allocation7], %s295
        %s297 = sand.u32 %s77, 1
        %s298 = smul.addr %s297, 8
        %s299 = scalar_lea.vmem [#allocation6], %s298
        // Predicated region
        $region45: #{tpu_custom_call.1} parent=39 // pred_check
          %p300 = pneg %p90
        $region46: #{tpu_custom_call.1} parent=39 // pred_check_branch
          %302 = sbr.rel (%p300) target = $region48
        $region47: #{tpu_custom_call.1} parent=39 // pred_region
          %303 = dma.done %s296, 128
        $region48: #{tpu_custom_call.1} parent=39 // pred_fallthru
          _
        // Predicated region
        $region49: #{tpu_custom_call.1} parent=39 // pred_check
          %p304 = pneg %p111
        $region50: #{tpu_custom_call.1} parent=39 // pred_check_branch
          %306 = sbr.rel (%p304) target = $region52
        $region51: #{tpu_custom_call.1} parent=39 // pred_region
          %307 = dma.done [#allocation5], 64
        $region52: #{tpu_custom_call.1} parent=39 // pred_fallthru
          _
        // Predicated region
        $region53: #{tpu_custom_call.1} parent=39 // pred_check
          %p308 = pneg %p132
        $region54: #{tpu_custom_call.1} parent=39 // pred_check_branch
          %310 = sbr.rel (%p308) target = $region56
        $region55: #{tpu_custom_call.1} parent=39 // pred_region
          %311 = dma.done [#allocation10], 64
        $region56: #{tpu_custom_call.1} parent=39 // pred_fallthru
          _
        // Predicated region
        $region57: #{tpu_custom_call.1} parent=39 // pred_check
          %p312 = pneg %p153
        $region58: #{tpu_custom_call.1} parent=39 // pred_check_branch
          %314 = sbr.rel (%p312) target = $region60
        $region59: #{tpu_custom_call.1} parent=39 // pred_region
          %315 = dma.done [#allocation10], 16
        $region60: #{tpu_custom_call.1} parent=39 // pred_fallthru
          _
        %316 = sfence
        %s317 = sand.u32 %s49, 1
        %s318 = scalar_lea.sflag [#allocation3], %s317
        %s319 = sand.u32 %s49, 1
        %s320 = smul.addr %s319, 8
        %s321 = scalar_lea.vmem [#allocation2], %s320
        %p322 = pneg %p62
        %p323 = pneg %p59
        %s324 = sand.u32 %s77, 1
        %s325 = scalar_lea.sflag [#allocation7], %s324
        %s326 = sand.u32 %s77, 1
        %s327 = smul.addr %s326, 8
        %s328 = scalar_lea.vmem [#allocation6], %s327
        %p329 = pneg %p90
        %p330 = pneg %p87
        %p331 = pneg %p111
        %p332 = pneg %p108
        %p333 = pneg %p132
        %p334 = pneg %p129
        %p335 = pneg %p153
        %p336 = pneg %p150
        %p337 = pneg %p181
        %p338 = pneg %p178
        %s339 = sand.u32 %s168, 1
        %s340 = scalar_lea.sflag [#allocation4], %s339
        %s341 = sand.u32 %s168, 1
        %s342 = smul.addr %s341, 8
        %s343 = scalar_lea.vmem [#allocation12], %s342
        %v344 = vld [vmem:[%s290] sm:$0x3]
        %s345 = sld [smem:[#allocation8]]
        %v346 = vstv %s345
        %v347 = vmul.f32 %v344, %v346
        %s348 = sld [smem:[#allocation11]]
        %v349 = vstv %s348
        %v350 = vadd.f32 %v347, %v349
        %v351 = vld [vmem:[%s299] sm:$0x3]
        %s352 = sld [smem:[#allocation9]]
        %v353 = vstv %s352
        %v354 = vmul.f32 %v351, %v353
        %v355 = vadd.f32 %v350, %v354
        %s356 = scalar_lea.vmem %s290, 2 [#allocation2]
        %v357 = vld [vmem:[%s356] sm:$0x3]
        %s358 = sld [smem:[#allocation8 + $0x1]]
        %v359 = vstv %s358
        %v360 = vmul.f32 %v357, %v359
        %v361 = vadd.f32 %v355, %v360
        %s362 = scalar_lea.vmem %s299, 2 [#allocation6]
        %v363 = vld [vmem:[%s362] sm:$0x3]
        %s364 = sld [smem:[#allocation9 + $0x1]]
        %v365 = vstv %s364
        %v366 = vmul.f32 %v363, %v365
        %v367 = vadd.f32 %v361, %v366
        %s368 = scalar_lea.vmem %s290, 4 [#allocation2]
        %v369 = vld [vmem:[%s368] sm:$0x3]
        %s370 = sld [smem:[#allocation8 + $0x2]]
        %v371 = vstv %s370
        %v372 = vmul.f32 %v369, %v371
        %v373 = vadd.f32 %v367, %v372
        %s374 = scalar_lea.vmem %s299, 4 [#allocation6]
        %v375 = vld [vmem:[%s374] sm:$0x3]
        %s376 = sld [smem:[#allocation9 + $0x2]]
        %v377 = vstv %s376
        %v378 = vmul.f32 %v375, %v377
        %v379 = vadd.f32 %v373, %v378
        %s380 = scalar_lea.vmem %s290, 6 [#allocation2]
        %v381 = vld [vmem:[%s380] sm:$0x3]
        %s382 = sld [smem:[#allocation8 + $0x3]]
        %v383 = vstv %s382
        %v384 = vmul.f32 %v381, %v383
        %v385 = vadd.f32 %v379, %v384
        %s386 = scalar_lea.vmem %s299, 6 [#allocation6]
        %v387 = vld [vmem:[%s386] sm:$0x3]
        %s388 = sld [smem:[#allocation9 + $0x3]]
        %v389 = vstv %s388
        %v390 = vmul.f32 %v387, %v389
        %v391 = vadd.f32 %v385, %v390
        %v392 = vmax.f32 %v391, 0.0
        %v393 = vlaneseq
        %vm394 = vcmp.ge.s32.totalorder %v393, 0
        %vm395 = vcmp.lt.s32.totalorder %v393, 256
        %vm396 = vmand %vm394, %vm395
        %397 = vst.msk [vmem:[%s343] sm:$0x3] %vm396, %v392
        %v398 = vld [vmem:[%s290] sm:$0x3]
        %s399 = sld [smem:[#allocation8 + $0x80]]
        %v400 = vstv %s399
        %v401 = vmul.f32 %v398, %v400
        %s402 = sld [smem:[#allocation11 + $0x1]]
        %v403 = vstv %s402
        %v404 = vadd.f32 %v401, %v403
        %v405 = vld [vmem:[%s299] sm:$0x3]
        %s406 = sld [smem:[#allocation9 + $0x80]]
        %v407 = vstv %s406
        %v408 = vmul.f32 %v405, %v407
        %v409 = vadd.f32 %v404, %v408
        %v410 = vld [vmem:[%s356] sm:$0x3]
        %s411 = sld [smem:[#allocation8 + $0x81]]
        %v412 = vstv %s411
        %v413 = vmul.f32 %v410, %v412
        %v414 = vadd.f32 %v409, %v413
        %v415 = vld [vmem:[%s362] sm:$0x3]
        %s416 = sld [smem:[#allocation9 + $0x81]]
        %v417 = vstv %s416
        %v418 = vmul.f32 %v415, %v417
        %v419 = vadd.f32 %v414, %v418
        %v420 = vld [vmem:[%s368] sm:$0x3]
        %s421 = sld [smem:[#allocation8 + $0x82]]
        %v422 = vstv %s421
        %v423 = vmul.f32 %v420, %v422
        %v424 = vadd.f32 %v419, %v423
        %v425 = vld [vmem:[%s374] sm:$0x3]
        %s426 = sld [smem:[#allocation9 + $0x82]]
        %v427 = vstv %s426
        %v428 = vmul.f32 %v425, %v427
        %v429 = vadd.f32 %v424, %v428
        %v430 = vld [vmem:[%s380] sm:$0x3]
        %s431 = sld [smem:[#allocation8 + $0x83]]
        %v432 = vstv %s431
        %v433 = vmul.f32 %v430, %v432
        %v434 = vadd.f32 %v429, %v433
        %v435 = vld [vmem:[%s386] sm:$0x3]
        %s436 = sld [smem:[#allocation9 + $0x83]]
        %v437 = vstv %s436
        %v438 = vmul.f32 %v435, %v437
        %v439 = vadd.f32 %v434, %v438
        %v440 = vmax.f32 %v439, 0.0
        %s441 = scalar_lea.vmem %s343, 2 [#allocation12]
        %442 = vst.msk [vmem:[%s441] sm:$0x3] %vm396, %v440
        %v443 = vld [vmem:[%s290] sm:$0x3]
        %s444 = sld [smem:[#allocation8 + $0x100]]
        %v445 = vstv %s444
        %v446 = vmul.f32 %v443, %v445
        %s447 = sld [smem:[#allocation11 + $0x2]]
        %v448 = vstv %s447
        %v449 = vadd.f32 %v446, %v448
        %v450 = vld [vmem:[%s299] sm:$0x3]
        %s451 = sld [smem:[#allocation9 + $0x100]]
        %v452 = vstv %s451
        %v453 = vmul.f32 %v450, %v452
        %v454 = vadd.f32 %v449, %v453
        %v455 = vld [vmem:[%s356] sm:$0x3]
        %s456 = sld [smem:[#allocation8 + $0x101]]
        %v457 = vstv %s456
        %v458 = vmul.f32 %v455, %v457
        %v459 = vadd.f32 %v454, %v458
        %v460 = vld [vmem:[%s362] sm:$0x3]
        %s461 = sld [smem:[#allocation9 + $0x101]]
        %v462 = vstv %s461
        %v463 = vmul.f32 %v460, %v462
        %v464 = vadd.f32 %v459, %v463
        %v465 = vld [vmem:[%s368] sm:$0x3]
        %s466 = sld [smem:[#allocation8 + $0x102]]
        %v467 = vstv %s466
        %v468 = vmul.f32 %v465, %v467
        %v469 = vadd.f32 %v464, %v468
        %v470 = vld [vmem:[%s374] sm:$0x3]
        %s471 = sld [smem:[#allocation9 + $0x102]]
        %v472 = vstv %s471
        %v473 = vmul.f32 %v470, %v472
        %v474 = vadd.f32 %v469, %v473
        %v475 = vld [vmem:[%s380] sm:$0x3]
        %s476 = sld [smem:[#allocation8 + $0x103]]
        %v477 = vstv %s476
        %v478 = vmul.f32 %v475, %v477
        %v479 = vadd.f32 %v474, %v478
        %v480 = vld [vmem:[%s386] sm:$0x3]
        %s481 = sld [smem:[#allocation9 + $0x103]]
        %v482 = vstv %s481
        %v483 = vmul.f32 %v480, %v482
        %v484 = vadd.f32 %v479, %v483
        %v485 = vmax.f32 %v484, 0.0
        %s486 = scalar_lea.vmem %s343, 4 [#allocation12]
        %487 = vst.msk [vmem:[%s486] sm:$0x3] %vm396, %v485
        %v488 = vld [vmem:[%s290] sm:$0x3]
        %s489 = sld [smem:[#allocation8 + $0x180]]
        %v490 = vstv %s489
        %v491 = vmul.f32 %v488, %v490
        %s492 = sld [smem:[#allocation11 + $0x3]]
        %v493 = vstv %s492
        %v494 = vadd.f32 %v491, %v493
        %v495 = vld [vmem:[%s299] sm:$0x3]
        %s496 = sld [smem:[#allocation9 + $0x180]]
        %v497 = vstv %s496
        %v498 = vmul.f32 %v495, %v497
        %v499 = vadd.f32 %v494, %v498
        %v500 = vld [vmem:[%s356] sm:$0x3]
        %s501 = sld [smem:[#allocation8 + $0x181]]
        %v502 = vstv %s501
        %v503 = vmul.f32 %v500, %v502
        %v504 = vadd.f32 %v499, %v503
        %v505 = vld [vmem:[%s362] sm:$0x3]
        %s506 = sld [smem:[#allocation9 + $0x181]]
        %v507 = vstv %s506
        %v508 = vmul.f32 %v505, %v507
        %v509 = vadd.f32 %v504, %v508
        %v510 = vld [vmem:[%s368] sm:$0x3]
        %s511 = sld [smem:[#allocation8 + $0x182]]
        %v512 = vstv %s511
        %v513 = vmul.f32 %v510, %v512
        %v514 = vadd.f32 %v509, %v513
        %v515 = vld [vmem:[%s374] sm:$0x3]
        %s516 = sld [smem:[#allocation9 + $0x182]]
        %v517 = vstv %s516
        %v518 = vmul.f32 %v515, %v517
        %v519 = vadd.f32 %v514, %v518
        %v520 = vld [vmem:[%s380] sm:$0x3]
        %s521 = sld [smem:[#allocation8 + $0x183]]
        %v522 = vstv %s521
        %v523 = vmul.f32 %v520, %v522
        %v524 = vadd.f32 %v519, %v523
        %v525 = vld [vmem:[%s386] sm:$0x3]
        %s526 = sld [smem:[#allocation9 + $0x183]]
        %v527 = vstv %s526
        %v528 = vmul.f32 %v525, %v527
        %v529 = vadd.f32 %v524, %v528
        %v530 = vmax.f32 %v529, 0.0
        %s531 = scalar_lea.vmem %s343, 6 [#allocation12]
        %532 = vst.msk [vmem:[%s531] sm:$0x3] %vm396, %v530
        %s533 = sand.u32 %s168, 1
        %s534 = scalar_lea.sflag [#allocation4], %s533
        %s535 = sand.u32 %s168, 1
        %s536 = smul.addr %s535, 8
        %s537 = scalar_lea.vmem [#allocation12], %s536
        // Predicated region
        $region61: #{tpu_custom_call.1} parent=39 // pred_check
          %p538 = pneg %p178
        $region62: #{tpu_custom_call.1} parent=39 // pred_check_branch
          %540 = sbr.rel (%p538) target = $region64
        $region63: #{tpu_custom_call.1} parent=39 // pred_region
          %s542 = ssub.s32 128, 128
          %543 = vsyncadd %s534, %s542
          %s544 = smul.addr %s32, 2
          %s545 = smul.addr %s31, 8
          %s546 = sadd.s32 %s544, %s545
          %s547 = smul.addr %s546, 16
          %s548 = scalar_lea.hbm %s5, %s547
          %s549 = sshll.u32 %s537, 4
          %s550 = int_to_ptr.vmem [resolvable:$true] %s549
          %555 = dma.vmem_to_hbm [thread:$0]  %s550, 128, %s548, %s534, 32, 32, 2
        $region64: #{tpu_custom_call.1} parent=39 // pred_fallthru
          _
      $region40: #{tpu_custom_call.1} parent=5 // pred_fallthru
        _
      %p556 = scmp.le.s32.totalorder 2, %s22
      // Predicated region
      $region65: #{tpu_custom_call.1} parent=5 // pred_check
        %p557 = pneg %p556
      $region66: #{tpu_custom_call.1} parent=5 // pred_check_branch
        %559 = sbr.rel (%p557) target = $region68
      $region67: #{tpu_custom_call.1} parent=5 // pred_region
        %s560 = ssub.s32 %s22, 2
        // Predicated region
        $region69: #{tpu_custom_call.1} parent=67 // pred_check
          %p561 = pneg %p184
        $region70: #{tpu_custom_call.1} parent=67 // pred_check_branch
          %563 = sbr.rel (%p561) target = $region72
        $region71: #{tpu_custom_call.1} parent=67 // pred_region
          %s564 = sand.u32 %s169, 1
          %s565 = scalar_lea.sflag [#allocation4], %s564
          %s566 = sand.u32 %s169, 1
          %s567 = smul.addr %s566, 8
          %s568 = scalar_lea.vmem [#allocation12], %s567
          %569 = dma.done %s565, 128
        $region72: #{tpu_custom_call.1} parent=67 // pred_fallthru
          _
      $region68: #{tpu_custom_call.1} parent=5 // pred_fallthru
        _
    $region6: #{tpu_custom_call.1} parent=1 // loop_footer
      %s26 = sadd.s32 1, %s22
    $region7: #{tpu_custom_call.1} parent=1 // loop_footer_branch
      %21 = sbr.rel target = $region3
    $region8: #{tpu_custom_call.1} parent=1 // loop_exit
      _
    %570 = vsyncpa [#allocation3], 1
    %s571 = scalar_lea.sflag [#allocation3], 1
    %572 = vsyncpa %s571, 1
    %573 = vsyncpa [#allocation7], 1
    %s574 = scalar_lea.sflag [#allocation7], 1
    %575 = vsyncpa %s574, 1
    %576 = vsyncpa [#allocation4], 1
    %s577 = scalar_lea.sflag [#allocation4], 1
    %578 = vsyncpa %s577, 1
    %579 = vsyncpa [#allocation5], 1
    %s580 = scalar_lea.sflag [#allocation5], 1
    %581 = vsyncpa %s580, 1
    %582 = vsyncpa [#allocation10], 1

</llo_original>
